<compile_context>
chip_gen: v7x
topology: tpu7x:2x2x1
jax: 0.10.0
libtpu: 0.0.40
codegen_flags: <defaults>
</compile_context>

<pallas_src>
import functools
import math

import jax
import jax.numpy as jnp
from jax import lax
from jax.experimental import pallas as pl
from jax.experimental.pallas import tpu as pltpu


def _rel_pos_emb_kernel(rstrip_ref, out_ref, *, src_len, tq, tr, ts, d):
    """Writes one (tq, ts*d) lane-dense tile of the flattened output.

    out2d[i, j*d + c] == rstrip[i + (src_len - 1 - j), c]
    """
    q0 = pl.program_id(0) * tq           # first target (query) row of this tile
    j0 = pl.program_id(1) * ts           # first source position of this tile
    base = q0 + (src_len - 1) - j0       # strip row for (row r=0, chunk jj=0)

    n_sub = tq // tr                     # row sub-tiles (bounded register use)

    def row_block(rb, carry):
        r0 = pl.multiple_of(rb * tr, tr)
        for jj in range(ts):             # static unroll -> static lane offsets
            # clamp only ever fires for out-of-range source columns of a
            # ragged boundary block; those outputs are discarded on writeback.
            start = jnp.maximum(base + r0 - jj, 0)
            rows = rstrip_ref[pl.ds(start, tr), :]              # (tr, d)
            out_ref[pl.ds(r0, tr), pl.ds(jj * d, d)] = rows
        return carry

    lax.fori_loop(0, n_sub, row_block, 0)


def _select_tiles(src_len, tgt_len, d, itemsize, target_block_bytes):
    """Pick (tq, tr, ts): row tile, in-register row sub-tile, source chunk."""
    # ts source positions per block; ts*d must be a multiple of 128 lanes
    # (or the full width).  Keep the static unroll (ts chunks) small.
    unit = 128 // math.gcd(d, 128)
    max_chunks = max(unit, 16)
    if src_len <= max_chunks:
        ts = src_len                                  # full-width block
    else:
        ts = (max_chunks // unit) * unit              # lane-dense partial block

    # Row sub-tile processed per load/store pair: ~8 KiB of values in vregs.
    tr = max(8, (8192 // (d * itemsize)) // 8 * 8)
    if tgt_len <= tr:
        tr = tgt_len
        tq = tgt_len                                  # block = full (small) dim
    else:
        row_bytes = ts * d * itemsize
        tq = max(tr, (target_block_bytes // row_bytes) // tr * tr)
        tq = min(tq, (tgt_len // tr) * tr)            # multiple of tr, <= tgt
    return tq, tr, ts


def relative_positional_embedding(embeddings_table, src_len, tgt_len,
                                  max_relative_position, *,
                                  target_block_bytes=None):
    """Pallas forward. Returns (tgt_len, src_len, embedding_dim)."""
    num_emb, d = embeddings_table.shape
    assert num_emb == 2 * max_relative_position + 1
    dtype = embeddings_table.dtype
    itemsize = jnp.dtype(dtype).itemsize

    if target_block_bytes is None:
        try:  # generation-aware budget (v7x has only 64 MiB VMEM per core)
            vmem_cap = pltpu.get_tpu_info().vmem_capacity_bytes
        except Exception:
            vmem_cap = 64 * 1024 * 1024
        target_block_bytes = int(min(4 << 20, max(1 << 20, vmem_cap // 16)))

    tq, tr, ts = _select_tiles(src_len, tgt_len, d, itemsize,
                               target_block_bytes)

    # Pad the strip so ragged final row-tiles never read past its end.
    pad_q = (-tgt_len) % tq
    strip_rows = tgt_len + src_len - 1 + pad_q

    # Reversed Toeplitz strip (tiny: O((tgt+src) * D)), built in plain JAX:
    #   out[i, j, :] == rstrip[i + (src_len - 1 - j), :]
    m = jnp.arange(strip_rows, dtype=jnp.int32)
    idx = jnp.clip(src_len - 1 - m, -max_relative_position,
                   max_relative_position) + max_relative_position
    rstrip = jnp.take(embeddings_table, idx, axis=0)          # (strip_rows, d)

    grid = (pl.cdiv(tgt_len, tq), pl.cdiv(src_len, ts))
    block_bytes = tq * ts * d * itemsize
    strip_bytes = strip_rows * d * itemsize
    out_bytes = tgt_len * src_len * d * itemsize
    vmem_limit = int(min(128 << 20,
                         max(32 << 20,
                             2 * block_bytes + 2 * strip_bytes + (4 << 20))))

    kernel = functools.partial(_rel_pos_emb_kernel, src_len=src_len,
                               tq=tq, tr=tr, ts=ts, d=d)
    out2d = pl.pallas_call(
        kernel,
        out_shape=jax.ShapeDtypeStruct((tgt_len, src_len * d), dtype),
        grid_spec=pltpu.PrefetchScalarGridSpec(
            num_scalar_prefetch=0,
            grid=grid,
            in_specs=[pl.BlockSpec((strip_rows, d), lambda i, j: (0, 0))],
            out_specs=pl.BlockSpec((tq, ts * d), lambda i, j: (i, j)),
        ),
        compiler_params=pltpu.CompilerParams(
            dimension_semantics=("parallel", "parallel"),
            vmem_limit_bytes=vmem_limit,
        ),
        cost_estimate=pl.CostEstimate(flops=0, transcendentals=0,
                                      bytes_accessed=out_bytes + strip_bytes),
    )(rstrip)

    # Free reshape (row-major compatible) back to the PyTorch output layout.
    return out2d.reshape(tgt_len, src_len, d)


def _reference(embeddings_table, src_len, tgt_len, max_relative_position):
    """Plain-JAX reference mirroring the PyTorch forward exactly."""
    rq = jnp.arange(tgt_len)
    rk = jnp.arange(src_len)
    dist = rk[None, :] - rq[:, None]
    idx = jnp.clip(dist, -max_relative_position, max_relative_position) \
        + max_relative_position
    return embeddings_table[idx]


def _make_table(key, max_relative_position, embedding_dim):
    num_embeddings = 2 * max_relative_position + 1
    bound = (6.0 / (num_embeddings + embedding_dim)) ** 0.5   # xavier_uniform_
    return jax.random.uniform(key, (num_embeddings, embedding_dim),
                              dtype=jnp.float32, minval=-bound, maxval=bound)


if __name__ == "__main__":
    key = jax.random.PRNGKey(0)
    k1, k2 = jax.random.split(key)

    # Case 1: small shapes consistent with the module (seq=8, hidden=32).
    max_rel, d, src_len, tgt_len = 8, 32, 8, 8
    table = _make_table(k1, max_rel, d)
    out = relative_positional_embedding(table, src_len, tgt_len, max_rel)
    out = jax.block_until_ready(out)
    ref = _reference(table, src_len, tgt_len, max_rel)
    assert out.shape == (tgt_len, src_len, d)
    assert jnp.allclose(out, ref, atol=1e-6, rtol=1e-6), "case 1 mismatch"

    # Case 2: larger, exercises multi-step grid and ragged boundary tiles.
    max_rel2, d2, src_len2, tgt_len2 = 16, 64, 150, 200
    table2 = _make_table(k2, max_rel2, d2)
    out2 = relative_positional_embedding(table2, src_len2, tgt_len2, max_rel2)
    out2 = jax.block_until_ready(out2)
    ref2 = _reference(table2, src_len2, tgt_len2, max_rel2)
    assert out2.shape == (tgt_len2, src_len2, d2)
    assert jnp.allclose(out2, ref2, atol=1e-6, rtol=1e-6), "case 2 mismatch"

    print("KERNEL_OK")
</pallas_src>

<mosaic_0001>
module attributes {stable_mosaic.version = 11 : i64} {
  func.func @_rel_pos_emb_kernel(%arg0: i32, %arg1: i32, %arg2: memref<15x32xf32, #tpu.memory_space<vmem>>, %arg3: memref<8x256xf32, #tpu.memory_space<vmem>>) attributes {dimension_semantics = [#tpu.dimension_semantics<parallel>, #tpu.dimension_semantics<parallel>], iteration_bounds = array<i64: 1, 1>, scalar_prefetch = 0 : i64, scratch_operands = 0 : i64, tpu.core_type = #tpu.core_type<tc>, window_params = [{pipeline_mode = #tpu.pipeline_mode<synchronous>, transform_indices = @transform_0, window_bounds = array<i64: 15, 32>}, {transform_indices = @transform_1, window_bounds = array<i64: 8, 256>}]} {
    %c8_i32 = arith.constant 8 : i32
    %0 = arith.muli %arg0, %c8_i32 : i32
    %c8_i32_0 = arith.constant 8 : i32
    %1 = arith.muli %arg1, %c8_i32_0 : i32
    %c7_i32 = arith.constant 7 : i32
    %2 = arith.addi %0, %c7_i32 : i32
    %3 = arith.subi %2, %1 : i32
    %c0_i32 = arith.constant 0 : i32
    %c8_i32_1 = arith.constant 8 : i32
    %4 = arith.muli %c0_i32, %c8_i32_1 : i32
    %5 = tpu.assume_multiple %4, 8 : i32
    %6 = arith.addi %3, %5 : i32
    %c0_i32_2 = arith.constant 0 : i32
    %7 = arith.subi %6, %c0_i32_2 : i32
    %c0_i32_3 = arith.constant 0 : i32
    %8 = arith.maxsi %7, %c0_i32_3 : i32
    %9 = arith.index_cast %8 : i32 to index
    %c0 = arith.constant 0 : index
    %10 = vector.load %arg2[%9, %c0] : memref<15x32xf32, #tpu.memory_space<vmem>>, vector<8x32xf32>
    %11 = arith.index_cast %5 : i32 to index
    %c0_4 = arith.constant 0 : index
    %12 = vector.load %arg3[%11, %c0_4] : memref<8x256xf32, #tpu.memory_space<vmem>>, vector<8x32xf32>
    tpu.vector_store %arg3[%11, %c0_4], %10 {strides = array<i32>} : memref<8x256xf32, #tpu.memory_space<vmem>>, vector<8x32xf32>,
    %13 = arith.addi %3, %5 : i32
    %c1_i32 = arith.constant 1 : i32
    %14 = arith.subi %13, %c1_i32 : i32
    %c0_i32_5 = arith.constant 0 : i32
    %15 = arith.maxsi %14, %c0_i32_5 : i32
    %16 = arith.index_cast %15 : i32 to index
    %c0_6 = arith.constant 0 : index
    %17 = vector.load %arg2[%16, %c0_6] : memref<15x32xf32, #tpu.memory_space<vmem>>, vector<8x32xf32>
    %18 = arith.index_cast %5 : i32 to index
    %c32 = arith.constant 32 : index
    %19 = vector.load %arg3[%18, %c32] : memref<8x256xf32, #tpu.memory_space<vmem>>, vector<8x32xf32>
    tpu.vector_store %arg3[%18, %c32], %17 {strides = array<i32>} : memref<8x256xf32, #tpu.memory_space<vmem>>, vector<8x32xf32>,
    %20 = arith.addi %3, %5 : i32
    %c2_i32 = arith.constant 2 : i32
    %21 = arith.subi %20, %c2_i32 : i32
    %c0_i32_7 = arith.constant 0 : i32
    %22 = arith.maxsi %21, %c0_i32_7 : i32
    %23 = arith.index_cast %22 : i32 to index
    %c0_8 = arith.constant 0 : index
    %24 = vector.load %arg2[%23, %c0_8] : memref<15x32xf32, #tpu.memory_space<vmem>>, vector<8x32xf32>
    %25 = arith.index_cast %5 : i32 to index
    %c64 = arith.constant 64 : index
    %26 = vector.load %arg3[%25, %c64] : memref<8x256xf32, #tpu.memory_space<vmem>>, vector<8x32xf32>
    tpu.vector_store %arg3[%25, %c64], %24 {strides = array<i32>} : memref<8x256xf32, #tpu.memory_space<vmem>>, vector<8x32xf32>,
    %27 = arith.addi %3, %5 : i32
    %c3_i32 = arith.constant 3 : i32
    %28 = arith.subi %27, %c3_i32 : i32
    %c0_i32_9 = arith.constant 0 : i32
    %29 = arith.maxsi %28, %c0_i32_9 : i32
    %30 = arith.index_cast %29 : i32 to index
    %c0_10 = arith.constant 0 : index
    %31 = vector.load %arg2[%30, %c0_10] : memref<15x32xf32, #tpu.memory_space<vmem>>, vector<8x32xf32>
    %32 = arith.index_cast %5 : i32 to index
    %c96 = arith.constant 96 : index
    %33 = vector.load %arg3[%32, %c96] : memref<8x256xf32, #tpu.memory_space<vmem>>, vector<8x32xf32>
    tpu.vector_store %arg3[%32, %c96], %31 {strides = array<i32>} : memref<8x256xf32, #tpu.memory_space<vmem>>, vector<8x32xf32>,
    %34 = arith.addi %3, %5 : i32
    %c4_i32 = arith.constant 4 : i32
    %35 = arith.subi %34, %c4_i32 : i32
    %c0_i32_11 = arith.constant 0 : i32
    %36 = arith.maxsi %35, %c0_i32_11 : i32
    %37 = arith.index_cast %36 : i32 to index
    %c0_12 = arith.constant 0 : index
    %38 = vector.load %arg2[%37, %c0_12] : memref<15x32xf32, #tpu.memory_space<vmem>>, vector<8x32xf32>
    %39 = arith.index_cast %5 : i32 to index
    %c128 = arith.constant 128 : index
    %40 = vector.load %arg3[%39, %c128] : memref<8x256xf32, #tpu.memory_space<vmem>>, vector<8x32xf32>
    tpu.vector_store %arg3[%39, %c128], %38 {strides = array<i32>} : memref<8x256xf32, #tpu.memory_space<vmem>>, vector<8x32xf32>,
    %41 = arith.addi %3, %5 : i32
    %c5_i32 = arith.constant 5 : i32
    %42 = arith.subi %41, %c5_i32 : i32
    %c0_i32_13 = arith.constant 0 : i32
    %43 = arith.maxsi %42, %c0_i32_13 : i32
    %44 = arith.index_cast %43 : i32 to index
    %c0_14 = arith.constant 0 : index
    %45 = vector.load %arg2[%44, %c0_14] : memref<15x32xf32, #tpu.memory_space<vmem>>, vector<8x32xf32>
    %46 = arith.index_cast %5 : i32 to index
    %c160 = arith.constant 160 : index
    %47 = vector.load %arg3[%46, %c160] : memref<8x256xf32, #tpu.memory_space<vmem>>, vector<8x32xf32>
    tpu.vector_store %arg3[%46, %c160], %45 {strides = array<i32>} : memref<8x256xf32, #tpu.memory_space<vmem>>, vector<8x32xf32>,
    %48 = arith.addi %3, %5 : i32
    %c6_i32 = arith.constant 6 : i32
    %49 = arith.subi %48, %c6_i32 : i32
    %c0_i32_15 = arith.constant 0 : i32
    %50 = arith.maxsi %49, %c0_i32_15 : i32
    %51 = arith.index_cast %50 : i32 to index
    %c0_16 = arith.constant 0 : index
    %52 = vector.load %arg2[%51, %c0_16] : memref<15x32xf32, #tpu.memory_space<vmem>>, vector<8x32xf32>
    %53 = arith.index_cast %5 : i32 to index
    %c192 = arith.constant 192 : index
    %54 = vector.load %arg3[%53, %c192] : memref<8x256xf32, #tpu.memory_space<vmem>>, vector<8x32xf32>
    tpu.vector_store %arg3[%53, %c192], %52 {strides = array<i32>} : memref<8x256xf32, #tpu.memory_space<vmem>>, vector<8x32xf32>,
    %55 = arith.addi %3, %5 : i32
    %c7_i32_17 = arith.constant 7 : i32
    %56 = arith.subi %55, %c7_i32_17 : i32
    %c0_i32_18 = arith.constant 0 : i32
    %57 = arith.maxsi %56, %c0_i32_18 : i32
    %58 = arith.index_cast %57 : i32 to index
    %c0_19 = arith.constant 0 : index
    %59 = vector.load %arg2[%58, %c0_19] : memref<15x32xf32, #tpu.memory_space<vmem>>, vector<8x32xf32>
    %60 = arith.index_cast %5 : i32 to index
    %c224 = arith.constant 224 : index
    %61 = vector.load %arg3[%60, %c224] : memref<8x256xf32, #tpu.memory_space<vmem>>, vector<8x32xf32>
    tpu.vector_store %arg3[%60, %c224], %59 {strides = array<i32>} : memref<8x256xf32, #tpu.memory_space<vmem>>, vector<8x32xf32>,
    %c1_i32_20 = arith.constant 1 : i32
    return
  }
  func.func @transform_0(%arg0: i32, %arg1: i32) -> (i32, i32) {
    %c0_i32 = arith.constant 0 : i32
    %c0_i32_0 = arith.constant 0 : i32
    %c0_i32_1 = arith.constant 0 : i32
    return %c0_i32, %c0_i32_0 : i32, i32
  }
  func.func @transform_1(%arg0: i32, %arg1: i32) -> (i32, i32) {
    %c0_i32 = arith.constant 0 : i32
    return %arg0, %arg1 : i32, i32
  }
}

</mosaic_0001>

<llo_original>
// kernel: tpu_custom_call.1
$region0: #{tpu_custom_call.1}
  #allocation0 [shape = 'u32[]', space=smem, size = 0x4, offset = 0x4, fixed_abs, tag = 'smem constant byte address 0x4 - core index']
  #allocation1 [shape = 'u32[144,128]{1,0:T(1,128)}', space=vmem, size = 0x12000, scoped, tag = 'internal scratch']
  %s0 = inlined_call_operand.hbm [shape: f32[15,32], index: 0, kind: input, shape index: {}]
  %s1 = inlined_call_operand.hbm [shape: f32[8,256], index: 1, kind: output, shape index: {}]
  %s2 = sld [smem:[#allocation0]]
  $region18: #{tpu_custom_call.1} parent=0
    _
  %s4 = ssub.s32 1, %s2
  %s5 = scalar_select 0, %s4, %s2
  $region1: #{tpu_custom_call.1} parent=0
    #allocation2 [shape = 'u8[8192]{0}', space=vmem, size = 0x2000, scoped, tag = 'input window, operand 0, single buffered']
    #allocation3 [shape = 's32[1]{0}', space=sflag, size = 0x4, scoped, tag = 'scoped memory for tpu_custom_call.1']
    #allocation4 [shape = 's32[1]{0}', space=sflag, size = 0x4, scoped, tag = 'scoped memory for tpu_custom_call.1']
    #allocation5 [shape = 'u8[8192]{0}', space=vmem, size = 0x2000, scoped, tag = 'output window, operand 0, single buffered']
    %6 = vsyncpa [#allocation3], 0
    %7 = vsyncpa [#allocation4], 0
    // Predicated region
    $region2: #{tpu_custom_call.1} parent=1 // pred_check
      _
    $region3: #{tpu_custom_call.1} parent=1 // pred_check_branch
      %9 = sbr.rel (0) target = $region5
    $region4: #{tpu_custom_call.1} parent=1 // pred_region
      %s11 = ssub.s32 256, 256
      %12 = vsyncadd [#allocation3], %s11
      %s13 = sshll.u32 [#allocation2], 4
      %s14 = int_to_ptr.vmem [resolvable:$true] %s13
      %19 = dma.hbm_to_vmem [thread:$0]  %s0, 256, %s14, [#allocation3], 128, 128, 8
    $region5: #{tpu_custom_call.1} parent=1 // pred_fallthru
      _
    // Predicated region
    $region6: #{tpu_custom_call.1} parent=1 // pred_check
      _
    $region7: #{tpu_custom_call.1} parent=1 // pred_check_branch
      %21 = sbr.rel (0) target = $region9
    $region8: #{tpu_custom_call.1} parent=1 // pred_region
      %22 = dma.done [#allocation3], 256
    $region9: #{tpu_custom_call.1} parent=1 // pred_fallthru
      _
    %s23 = smul.u32 0, 8
    %s24 = smul.u32 0, 8
    %s25 = sadd.s32 %s23, 7
    %s26 = ssub.s32 %s25, %s24
    %s27 = sadd.s32 %s26, 0
    %p28 = scmp.gt.s32.totalorder %s27, 0
    %s29 = scalar_select %p28, %s27, 0
    %s30 = scalar_lea.vmem [#allocation2], %s29
    %v31 = vld [vmem:[%s30] sm:$0xff]
    %s32 = smul.u32 0, 2
    %s33 = smul.addr %s32, 8
    %s34 = scalar_lea.vmem [#allocation5], %s33
    %vm35 = vcmask 261120
    %36 = vst.msk [vmem:[%s34] sm:$0xff] %vm35, %v31
    %s37 = ssub.s32 %s27, 1
    %p38 = scmp.gt.s32.totalorder %s37, 0
    %s39 = scalar_select %p38, %s37, 0
    %s40 = scalar_lea.vmem [#allocation2], %s39
    %v41 = vld [vmem:[%s40] sm:$0xff]
    %43 = vrot.lane.b32.xlu0 %v41, 32
    %v44 = vpop.permute.xlu0 %43
    %vm46 = vcmask 523520
    %47 = vst.msk [vmem:[%s34] sm:$0xff] %vm46, %v44
    %s48 = ssub.s32 %s27, 2
    %p49 = scmp.gt.s32.totalorder %s48, 0
    %s50 = scalar_select %p49, %s48, 0
    %s51 = scalar_lea.vmem [#allocation2], %s50
    %v52 = vld [vmem:[%s51] sm:$0xff]
    %54 = vrot.lane.b32.xlu0 %v52, 64
    %v55 = vpop.permute.xlu0 %54
    %vm57 = vcmask 785920
    %58 = vst.msk [vmem:[%s34] sm:$0xff] %vm57, %v55
    %s59 = ssub.s32 %s27, 3
    %p60 = scmp.gt.s32.totalorder %s59, 0
    %s61 = scalar_select %p60, %s59, 0
    %s62 = scalar_lea.vmem [#allocation2], %s61
    %v63 = vld [vmem:[%s62] sm:$0xff]
    %65 = vrot.lane.b32.xlu0 %v63, 96
    %v66 = vpop.permute.xlu0 %65
    %vm68 = vcmask 1048320
    %69 = vst.msk [vmem:[%s34] sm:$0xff] %vm68, %v66
    %s70 = ssub.s32 %s27, 4
    %p71 = scmp.gt.s32.totalorder %s70, 0
    %s72 = scalar_select %p71, %s70, 0
    %s73 = scalar_lea.vmem [#allocation2], %s72
    %v74 = vld [vmem:[%s73] sm:$0xff]
    %75 = vst.msk [vmem:[%s34 + $0x8] sm:$0xff] %vm35, %v74
    %s76 = ssub.s32 %s27, 5
    %p77 = scmp.gt.s32.totalorder %s76, 0
    %s78 = scalar_select %p77, %s76, 0
    %s79 = scalar_lea.vmem [#allocation2], %s78
    %v80 = vld [vmem:[%s79] sm:$0xff]
    %82 = vrot.lane.b32.xlu0 %v80, 32
    %v83 = vpop.permute.xlu0 %82
    %85 = vst.msk [vmem:[%s34 + $0x8] sm:$0xff] %vm46, %v83
    %s86 = ssub.s32 %s27, 6
    %p87 = scmp.gt.s32.totalorder %s86, 0
    %s88 = scalar_select %p87, %s86, 0
    %s89 = scalar_lea.vmem [#allocation2], %s88
    %v90 = vld [vmem:[%s89] sm:$0xff]
    %92 = vrot.lane.b32.xlu0 %v90, 64
    %v93 = vpop.permute.xlu0 %92
    %95 = vst.msk [vmem:[%s34 + $0x8] sm:$0xff] %vm57, %v93
    %s96 = ssub.s32 %s27, 7
    %p97 = scmp.gt.s32.totalorder %s96, 0
    %s98 = scalar_select %p97, %s96, 0
    %s99 = scalar_lea.vmem [#allocation2], %s98
    %v100 = vld [vmem:[%s99] sm:$0xff]
    %102 = vrot.lane.b32.xlu0 %v100, 96
    %v103 = vpop.permute.xlu0 %102
    %105 = vst.msk [vmem:[%s34 + $0x8] sm:$0xff] %vm68, %v103
    // Predicated region
    $region10: #{tpu_custom_call.1} parent=1 // pred_check
      _
    $region11: #{tpu_custom_call.1} parent=1 // pred_check_branch
      %107 = sbr.rel (0) target = $region13
    $region12: #{tpu_custom_call.1} parent=1 // pred_region
      %s109 = ssub.s32 256, 256
      %110 = vsyncadd [#allocation4], %s109
      %s112 = sshll.u32 [#allocation5], 4
      %s113 = int_to_ptr.vmem [resolvable:$true] %s112
      %115 = dma.vmem_to_hbm [thread:$0]  %s113, 256, %s1, [#allocation4]
    $region13: #{tpu_custom_call.1} parent=1 // pred_fallthru
      _
    // Predicated region
    $region14: #{tpu_custom_call.1} parent=1 // pred_check
      _
    $region15: #{tpu_custom_call.1} parent=1 // pred_check_branch
      %117 = sbr.rel (0) target = $region17
    $region16: #{tpu_custom_call.1} parent=1 // pred_region
      %118 = dma.done [#allocation4], 256
    $region17: #{tpu_custom_call.1} parent=1 // pred_fallthru
      _
    %119 = vsyncpa [#allocation3], 1
    %120 = vsyncpa [#allocation4], 1

</llo_original>
